<compile_context>
chip_gen: v5e
topology: v5e:2x2
jax: 0.10.0
libtpu: 0.0.40
codegen_flags: <defaults>
</compile_context>

<pallas_src>
import jax
import jax.numpy as jnp
from jax.experimental import pallas as pl
from jax.experimental.pallas import tpu as pltpu


def _round_up(x, m):
    return (x + m - 1) // m * m


def _conv_stats_kernel(x_ref, w_ref, y_ref, sum_ref, sumsq_ref):
    # x_ref:   (TILE_M, Cin_p)  bf16      w_ref: (Cin_p, Cout_p) bf16
    # y_ref:   (TILE_M, Cout_p) f32  (pre-BN activation tile)
    # sum_ref / sumsq_ref: (1, Cout_p) f32 accumulators (same block every step)
    @pl.when(pl.program_id(0) == 0)
    def _():
        sum_ref[...] = jnp.zeros_like(sum_ref)
        sumsq_ref[...] = jnp.zeros_like(sumsq_ref)

    y = jnp.dot(x_ref[...], w_ref[...], preferred_element_type=jnp.float32)
    y_ref[...] = y
    sum_ref[...] += jnp.sum(y, axis=0, keepdims=True)
    sumsq_ref[...] += jnp.sum(y * y, axis=0, keepdims=True)


def _bn_apply_kernel(y_ref, scale_ref, shift_ref, o_ref):
    o_ref[...] = (y_ref[...] * scale_ref[...] + shift_ref[...]).astype(o_ref.dtype)


def downsample(x_nchw, conv_w, conv_b, bn_gamma, bn_beta, *, eps=1e-5, tile_m=256):
    """Conv2d(1x1, stride 2, pad 0) + BatchNorm2d (training-mode batch stats).

    x_nchw: (N, Cin, H, W); conv_w: (Cout, Cin, 1, 1); conv_b/bn_*: (Cout,).
    Returns (N, Cout, ceil(H/2), ceil(W/2)) float32 in NCHW.
    """
    del conv_b  # Cancelled exactly by the BN batch-mean subtraction that follows.

    n, cin, h, w = x_nchw.shape
    cout = conv_w.shape[0]
    ho, wo = (h + 1) // 2, (w + 1) // 2
    m_real = n * ho * wo

    cin_p = _round_up(cin, 128)
    cout_p = _round_up(cout, 128)
    m_pad = _round_up(m_real, tile_m)
    grid_m = m_pad // tile_m

    # --- glue: subsample BEFORE the transpose (1/4 of the transposed bytes) --
    x_sub = x_nchw[:, :, ::2, ::2]                         # (N, Cin, Ho, Wo)
    x_nhwc = jnp.transpose(x_sub, (0, 2, 3, 1))            # (N, Ho, Wo, Cin)
    x_flat = x_nhwc.reshape(m_real, cin).astype(jnp.float32)
    x_flat = jnp.pad(x_flat, ((0, m_pad - m_real), (0, cin_p - cin)))
    x_flat = x_flat.astype(jnp.bfloat16)                   # halve HBM bytes on the big stream

    w_mat = conv_w.reshape(cout, cin).T.astype(jnp.float32)    # (Cin, Cout)
    w_mat = jnp.pad(w_mat, ((0, cin_p - cin), (0, cout_p - cout)))
    w_mat = w_mat.astype(jnp.bfloat16)

    gamma_p = jnp.pad(bn_gamma.astype(jnp.float32), (0, cout_p - cout)).reshape(1, cout_p)
    beta_p = jnp.pad(bn_beta.astype(jnp.float32), (0, cout_p - cout)).reshape(1, cout_p)

    # --- phase 1: 1x1-conv matmul + per-channel sum / sum-of-squares ---------
    flops1 = 2 * m_pad * cin_p * cout_p
    bytes1 = (m_pad * cin_p * 2 + cin_p * cout_p * 2
              + m_pad * cout_p * 4 + 2 * cout_p * 4)
    y_pre, ch_sum, ch_sumsq = pl.pallas_call(
        _conv_stats_kernel,
        out_shape=(
            jax.ShapeDtypeStruct((m_pad, cout_p), jnp.float32),
            jax.ShapeDtypeStruct((1, cout_p), jnp.float32),
            jax.ShapeDtypeStruct((1, cout_p), jnp.float32),
        ),
        grid=(grid_m,),
        in_specs=[
            pl.BlockSpec((tile_m, cin_p), lambda i: (i, 0)),
            pl.BlockSpec((cin_p, cout_p), lambda i: (0, 0)),
        ],
        out_specs=[
            pl.BlockSpec((tile_m, cout_p), lambda i: (i, 0)),
            pl.BlockSpec((1, cout_p), lambda i: (0, 0)),
            pl.BlockSpec((1, cout_p), lambda i: (0, 0)),
        ],
        compiler_params=pltpu.CompilerParams(
            dimension_semantics=("arbitrary",),   # carries the stats accumulator
            vmem_limit_bytes=32 * 1024 * 1024,
        ),
        cost_estimate=pl.CostEstimate(
            flops=flops1, transcendentals=0, bytes_accessed=bytes1),
    )(x_flat, w_mat)

    # --- fold BN into a per-channel scale/shift (tiny (Cout,)-sized ops) -----
    inv_m = 1.0 / float(m_real)
    mean = ch_sum * inv_m
    var = jnp.maximum(ch_sumsq * inv_m - mean * mean, 0.0)
    scale = gamma_p * jax.lax.rsqrt(var + eps)
    shift = beta_p - mean * scale

    # --- phase 2: normalize: out = y * scale + shift -------------------------
    flops2 = 2 * m_pad * cout_p
    bytes2 = 2 * m_pad * cout_p * 4 + 2 * cout_p * 4
    out_flat = pl.pallas_call(
        _bn_apply_kernel,
        out_shape=jax.ShapeDtypeStruct((m_pad, cout_p), jnp.float32),
        grid=(grid_m,),
        in_specs=[
            pl.BlockSpec((tile_m, cout_p), lambda i: (i, 0)),
            pl.BlockSpec((1, cout_p), lambda i: (0, 0)),
            pl.BlockSpec((1, cout_p), lambda i: (0, 0)),
        ],
        out_specs=pl.BlockSpec((tile_m, cout_p), lambda i: (i, 0)),
        compiler_params=pltpu.CompilerParams(
            dimension_semantics=("parallel",),    # shards tiles across both TCs on v7x
            vmem_limit_bytes=32 * 1024 * 1024,
        ),
        cost_estimate=pl.CostEstimate(
            flops=flops2, transcendentals=0, bytes_accessed=bytes2),
    )(y_pre, scale, shift)

    # (M, Cout) -> (N, Ho, Wo, Cout) -> NCHW
    out = out_flat[:m_real, :cout].reshape(n, ho, wo, cout)
    return jnp.transpose(out, (0, 3, 1, 2))


if __name__ == "__main__":
    key = jax.random.PRNGKey(0)
    k_x, k_w, k_b = jax.random.split(key, 3)

    N, Cin, H, W = 2, 4, 16, 16
    Cout = 8

    x = jax.random.normal(k_x, (N, Cin, H, W), dtype=jnp.float32)

    # Deterministic synthetic parameters (shapes match nn.Conv2d / nn.BatchNorm2d).
    conv_w = jax.random.normal(k_w, (Cout, Cin, 1, 1), dtype=jnp.float32) * 0.1
    conv_b = jax.random.normal(k_b, (Cout,), dtype=jnp.float32) * 0.1
    bn_gamma = jnp.ones((Cout,), dtype=jnp.float32)   # BatchNorm2d weight init
    bn_beta = jnp.zeros((Cout,), dtype=jnp.float32)   # BatchNorm2d bias init

    out = downsample(x, conv_w, conv_b, bn_gamma, bn_beta)
    jax.block_until_ready(out)

    # Pure-JAX f32 reference (conv 1x1 stride 2 + bias + training-mode BN).
    y_ref = jnp.einsum("nchw,oc->nohw", x[:, :, ::2, ::2], conv_w.reshape(Cout, Cin))
    y_ref = y_ref + conv_b[None, :, None, None]
    mu = y_ref.mean(axis=(0, 2, 3), keepdims=True)
    var = ((y_ref - mu) ** 2).mean(axis=(0, 2, 3), keepdims=True)
    y_ref = (y_ref - mu) / jnp.sqrt(var + 1e-5)
    y_ref = y_ref * bn_gamma[None, :, None, None] + bn_beta[None, :, None, None]

    assert out.shape == (N, Cout, H // 2, W // 2), out.shape
    # bf16 matmul inputs (f32 accumulation) -> slightly looser than the f32 check.
    max_err = float(jnp.max(jnp.abs(out - y_ref)))
    assert jnp.allclose(out, y_ref, atol=3e-2, rtol=3e-2), max_err
    print("KERNEL_OK")
</pallas_src>

<mosaic_0001>
module attributes {stable_mosaic.version = 11 : i64} {
  func.func @_conv_stats_kernel(%arg0: i32, %arg1: memref<256x128xbf16, #tpu.memory_space<vmem>>, %arg2: memref<128x128xbf16, #tpu.memory_space<vmem>>, %arg3: memref<256x128xf32, #tpu.memory_space<vmem>>, %arg4: memref<1x128xf32, #tpu.memory_space<vmem>>, %arg5: memref<1x128xf32, #tpu.memory_space<vmem>>) attributes {dimension_semantics = [#tpu.dimension_semantics<arbitrary>], iteration_bounds = array<i64: 1>, scalar_prefetch = 0 : i64, scratch_operands = 0 : i64, tpu.core_type = #tpu.core_type<tc>, window_params = [{transform_indices = @transform_0, window_bounds = array<i64: 256, 128>}, {pipeline_mode = #tpu.pipeline_mode<synchronous>, transform_indices = @transform_1, window_bounds = array<i64: 128, 128>}, {transform_indices = @transform_2, window_bounds = array<i64: 256, 128>}, {pipeline_mode = #tpu.pipeline_mode<synchronous>, transform_indices = @transform_3, window_bounds = array<i64: 1, 128>}, {pipeline_mode = #tpu.pipeline_mode<synchronous>, transform_indices = @transform_4, window_bounds = array<i64: 1, 128>}]} {
    %c0_i32 = arith.constant 0 : i32
    %0 = arith.cmpi eq, %arg0, %c0_i32 : i32
    %1 = arith.extui %0 : i1 to i32
    %c0_i32_0 = arith.constant 0 : i32
    %2 = arith.cmpi ne, %1, %c0_i32_0 : i32
    scf.if %2 {
      %cst_16 = arith.constant 0.000000e+00 : f32
      %18 = vector.broadcast %cst_16 : f32 to vector<1x128xf32>
      %c0_17 = arith.constant 0 : index
      %c0_18 = arith.constant 0 : index
      %19 = vector.load %arg4[%c0_17, %c0_18] : memref<1x128xf32, #tpu.memory_space<vmem>>, vector<1x128xf32>
      tpu.vector_store %arg4[%c0_17, %c0_18], %18 {strides = array<i32>} : memref<1x128xf32, #tpu.memory_space<vmem>>, vector<1x128xf32>,
      %cst_19 = arith.constant 0.000000e+00 : f32
      %20 = vector.broadcast %cst_19 : f32 to vector<1x128xf32>
      %c0_20 = arith.constant 0 : index
      %c0_21 = arith.constant 0 : index
      %21 = vector.load %arg5[%c0_20, %c0_21] : memref<1x128xf32, #tpu.memory_space<vmem>>, vector<1x128xf32>
      tpu.vector_store %arg5[%c0_20, %c0_21], %20 {strides = array<i32>} : memref<1x128xf32, #tpu.memory_space<vmem>>, vector<1x128xf32>,
    } else {
    }
    %c0 = arith.constant 0 : index
    %c0_1 = arith.constant 0 : index
    %3 = vector.load %arg1[%c0, %c0_1] : memref<256x128xbf16, #tpu.memory_space<vmem>>, vector<256x128xbf16>
    %c0_2 = arith.constant 0 : index
    %c0_3 = arith.constant 0 : index
    %4 = vector.load %arg2[%c0_2, %c0_3] : memref<128x128xbf16, #tpu.memory_space<vmem>>, vector<128x128xbf16>
    %cst = arith.constant dense<0.000000e+00> : vector<256x128xf32>
    %5 = tpu.matmul %3, %4, %cst {dimension_numbers = #tpu.dot_dimension_numbers<[1], [0], [0], [1], [0, 0, 1, 1], [], []>} : vector<256x128xbf16>, vector<128x128xbf16>, vector<256x128xf32> -> vector<256x128xf32>
    %c0_4 = arith.constant 0 : index
    %c0_5 = arith.constant 0 : index
    %6 = vector.load %arg3[%c0_4, %c0_5] : memref<256x128xf32, #tpu.memory_space<vmem>>, vector<256x128xf32>
    tpu.vector_store %arg3[%c0_4, %c0_5], %5 {strides = array<i32>} : memref<256x128xf32, #tpu.memory_space<vmem>>, vector<256x128xf32>,
    %c0_6 = arith.constant 0 : index
    %c0_7 = arith.constant 0 : index
    %7 = vector.load %arg4[%c0_6, %c0_7] : memref<1x128xf32, #tpu.memory_space<vmem>>, vector<1x128xf32>
    %cst_8 = arith.constant dense<0.000000e+00> : vector<128xf32>
    %8 = vector.multi_reduction <add>, %5, %cst_8 [0] : vector<256x128xf32> to vector<128xf32>
    %9 = vector.shape_cast %8 : vector<128xf32> to vector<1x128xf32>
    %10 = arith.addf %7, %9 : vector<1x128xf32>
    %c0_9 = arith.constant 0 : index
    %c0_10 = arith.constant 0 : index
    %11 = vector.load %arg4[%c0_9, %c0_10] : memref<1x128xf32, #tpu.memory_space<vmem>>, vector<1x128xf32>
    tpu.vector_store %arg4[%c0_9, %c0_10], %10 {strides = array<i32>} : memref<1x128xf32, #tpu.memory_space<vmem>>, vector<1x128xf32>,
    %c0_11 = arith.constant 0 : index
    %c0_12 = arith.constant 0 : index
    %12 = vector.load %arg5[%c0_11, %c0_12] : memref<1x128xf32, #tpu.memory_space<vmem>>, vector<1x128xf32>
    %13 = arith.mulf %5, %5 : vector<256x128xf32>
    %cst_13 = arith.constant dense<0.000000e+00> : vector<128xf32>
    %14 = vector.multi_reduction <add>, %13, %cst_13 [0] : vector<256x128xf32> to vector<128xf32>
    %15 = vector.shape_cast %14 : vector<128xf32> to vector<1x128xf32>
    %16 = arith.addf %12, %15 : vector<1x128xf32>
    %c0_14 = arith.constant 0 : index
    %c0_15 = arith.constant 0 : index
    %17 = vector.load %arg5[%c0_14, %c0_15] : memref<1x128xf32, #tpu.memory_space<vmem>>, vector<1x128xf32>
    tpu.vector_store %arg5[%c0_14, %c0_15], %16 {strides = array<i32>} : memref<1x128xf32, #tpu.memory_space<vmem>>, vector<1x128xf32>,
    return
  }
  func.func @transform_0(%arg0: i32) -> (i32, i32) {
    %c0_i32 = arith.constant 0 : i32
    %c0_i32_0 = arith.constant 0 : i32
    return %arg0, %c0_i32 : i32, i32
  }
  func.func @transform_1(%arg0: i32) -> (i32, i32) {
    %c0_i32 = arith.constant 0 : i32
    %c0_i32_0 = arith.constant 0 : i32
    %c0_i32_1 = arith.constant 0 : i32
    return %c0_i32, %c0_i32_0 : i32, i32
  }
  func.func @transform_2(%arg0: i32) -> (i32, i32) {
    %c0_i32 = arith.constant 0 : i32
    %c0_i32_0 = arith.constant 0 : i32
    return %arg0, %c0_i32 : i32, i32
  }
  func.func @transform_3(%arg0: i32) -> (i32, i32) {
    %c0_i32 = arith.constant 0 : i32
    %c0_i32_0 = arith.constant 0 : i32
    %c0_i32_1 = arith.constant 0 : i32
    return %c0_i32, %c0_i32_0 : i32, i32
  }
  func.func @transform_4(%arg0: i32) -> (i32, i32) {
    %c0_i32 = arith.constant 0 : i32
    %c0_i32_0 = arith.constant 0 : i32
    %c0_i32_1 = arith.constant 0 : i32
    return %c0_i32, %c0_i32_0 : i32, i32
  }
}

</mosaic_0001>

<llo_original>
// kernel: tpu_custom_call.1
$region0: #{tpu_custom_call.1}
  #allocation0 [shape = 'u32[]', space=smem, size = 0x4, offset = 0x4, fixed_abs, tag = 'smem constant byte address 0x4 - core index']
  #allocation1 [shape = 'u32[72,128]{1,0:T(1,128)}', space=vmem, size = 0x9000, scoped, tag = 'internal scratch']
  %s0 = inlined_call_operand.hbm [shape: bf16[256,128], index: 0, kind: input, shape index: {}]
  %s1 = inlined_call_operand.hbm [shape: bf16[128,128], index: 1, kind: input, shape index: {}]
  %s2 = inlined_call_operand.hbm [shape: f32[256,128], index: 2, kind: output, shape index: {0}]
  %s3 = inlined_call_operand.hbm [shape: f32[1,128], index: 3, kind: output, shape index: {1}]
  %s4 = inlined_call_operand.hbm [shape: f32[1,128], index: 4, kind: output, shape index: {2}]
  %5 = xla_tuple %s2, %s3, %s4
  %s6 = sld [smem:[#allocation0]]
  $region46: #{tpu_custom_call.1} parent=0
    _
  %s8 = ssub.s32 1, %s6
  %s9 = scalar_select 0, %s8, %s6
  $region1: #{tpu_custom_call.1} parent=0
    #allocation2 [shape = 'u8[65536]{0}', space=vmem, size = 0x10000, scoped, tag = 'input window, operand 0, single buffered']
    #allocation3 [shape = 's32[1]{0}', space=sflag, size = 0x4, scoped, tag = 'scoped memory for tpu_custom_call.1']
    #allocation4 [shape = 's32[1]{0}', space=sflag, size = 0x4, scoped, tag = 'scoped memory for tpu_custom_call.1']
    #allocation5 [shape = 'u8[32768]{0}', space=vmem, size = 0x8000, scoped, tag = 'input window, operand 1, single buffered']
    #allocation6 [shape = 's32[1]{0}', space=sflag, size = 0x4, scoped, tag = 'scoped memory for tpu_custom_call.1']
    #allocation7 [shape = 'u8[131072]{0}', space=vmem, size = 0x20000, scoped, tag = 'output window, operand 0, single buffered']
    #allocation8 [shape = 'u8[512]{0}', space=vmem, size = 0x400, scoped, tag = 'output window, operand 1, single buffered']
    #allocation9 [shape = 's32[1]{0}', space=sflag, size = 0x4, scoped, tag = 'scoped memory for tpu_custom_call.1']
    #allocation10 [shape = 'u8[512]{0}', space=vmem, size = 0x400, scoped, tag = 'output window, operand 2, single buffered']
    %10 = vsyncpa [#allocation3], 0
    %11 = vsyncpa [#allocation6], 0
    %12 = vsyncpa [#allocation4], 0
    %13 = vsyncpa [#allocation9], 0
    // Predicated region
    $region2: #{tpu_custom_call.1} parent=1 // pred_check
      _
    $region3: #{tpu_custom_call.1} parent=1 // pred_check_branch
      %15 = sbr.rel (0) target = $region5
    $region4: #{tpu_custom_call.1} parent=1 // pred_region
      %17 = vsyncadd [#allocation3], 0
      %s18 = sshll.u32 %s0, 4
      %s19 = int_to_ptr.hbm [resolvable:$true] %s18
      %s20 = sshll.u32 [#allocation2], 4
      %s21 = int_to_ptr.vmem [resolvable:$true] %s20
      %26 = dma.hbm_to_vmem [thread:$0]  %s19, 2048, %s21, [#allocation3], 64, 64, 4
    $region5: #{tpu_custom_call.1} parent=1 // pred_fallthru
      _
    // Predicated region
    $region6: #{tpu_custom_call.1} parent=1 // pred_check
      _
    $region7: #{tpu_custom_call.1} parent=1 // pred_check_branch
      %28 = sbr.rel (0) target = $region9
    $region8: #{tpu_custom_call.1} parent=1 // pred_region
      %30 = vsyncadd [#allocation6], 0
      %s31 = sshll.u32 %s1, 4
      %s32 = int_to_ptr.hbm [resolvable:$true] %s31
      %s33 = sshll.u32 [#allocation5], 4
      %s34 = int_to_ptr.vmem [resolvable:$true] %s33
      %39 = dma.hbm_to_vmem [thread:$0]  %s32, 1024, %s34, [#allocation6], 64, 64, 4
    $region9: #{tpu_custom_call.1} parent=1 // pred_fallthru
      _
    // Predicated region
    $region10: #{tpu_custom_call.1} parent=1 // pred_check
      _
    $region11: #{tpu_custom_call.1} parent=1 // pred_check_branch
      %41 = sbr.rel (0) target = $region13
    $region12: #{tpu_custom_call.1} parent=1 // pred_region
      %43 = dma.done [#allocation3], 2048
    $region13: #{tpu_custom_call.1} parent=1 // pred_fallthru
      _
    // Predicated region
    $region14: #{tpu_custom_call.1} parent=1 // pred_check
      _
    $region15: #{tpu_custom_call.1} parent=1 // pred_check_branch
      %45 = sbr.rel (0) target = $region17
    $region16: #{tpu_custom_call.1} parent=1 // pred_region
      %47 = dma.done [#allocation6], 1024
    $region17: #{tpu_custom_call.1} parent=1 // pred_fallthru
      _
    %p48 = scmp.eq.s32.totalorder 0, 0
    // Predicated region
    $region18: #{tpu_custom_call.1} parent=1 // pred_check
      %p49 = pneg %p48
    $region19: #{tpu_custom_call.1} parent=1 // pred_check_branch
      %51 = sbr.rel (%p49) target = $region21
    $region20: #{tpu_custom_call.1} parent=1 // pred_region
      %52 = vst [vmem:[#allocation8] sm:$0x1] 0.0
      %53 = vst [vmem:[#allocation10] sm:$0x1] 0.0
    $region21: #{tpu_custom_call.1} parent=1 // pred_fallthru
      _
    %v54 = vld [vmem:[#allocation2] sm:$0xf]
    %v55 = vld [vmem:[#allocation2 + $0x4] sm:$0xf]
    %v56 = vld [vmem:[#allocation2 + $0x8] sm:$0xf]
    %v57 = vld [vmem:[#allocation2 + $0xc] sm:$0xf]
    %v58 = vld [vmem:[#allocation2 + $0x10] sm:$0xf]
    %v59 = vld [vmem:[#allocation2 + $0x14] sm:$0xf]
    %v60 = vld [vmem:[#allocation2 + $0x18] sm:$0xf]
    %v61 = vld [vmem:[#allocation2 + $0x1c] sm:$0xf]
    %v62 = vld [vmem:[#allocation2 + $0x20] sm:$0xf]
    %v63 = vld [vmem:[#allocation2 + $0x24] sm:$0xf]
    %v64 = vld [vmem:[#allocation2 + $0x28] sm:$0xf]
    %v65 = vld [vmem:[#allocation2 + $0x2c] sm:$0xf]
    %v66 = vld [vmem:[#allocation2 + $0x30] sm:$0xf]
    %v67 = vld [vmem:[#allocation2 + $0x34] sm:$0xf]
    %v68 = vld [vmem:[#allocation2 + $0x38] sm:$0xf]
    %v69 = vld [vmem:[#allocation2 + $0x3c] sm:$0xf]
    %v70 = vld [vmem:[#allocation2 + $0x40] sm:$0xf]
    %v71 = vld [vmem:[#allocation2 + $0x44] sm:$0xf]
    %v72 = vld [vmem:[#allocation2 + $0x48] sm:$0xf]
    %v73 = vld [vmem:[#allocation2 + $0x4c] sm:$0xf]
    %v74 = vld [vmem:[#allocation2 + $0x50] sm:$0xf]
    %v75 = vld [vmem:[#allocation2 + $0x54] sm:$0xf]
    %v76 = vld [vmem:[#allocation2 + $0x58] sm:$0xf]
    %v77 = vld [vmem:[#allocation2 + $0x5c] sm:$0xf]
    %v78 = vld [vmem:[#allocation2 + $0x60] sm:$0xf]
    %v79 = vld [vmem:[#allocation2 + $0x64] sm:$0xf]
    %v80 = vld [vmem:[#allocation2 + $0x68] sm:$0xf]
    %v81 = vld [vmem:[#allocation2 + $0x6c] sm:$0xf]
    %v82 = vld [vmem:[#allocation2 + $0x70] sm:$0xf]
    %v83 = vld [vmem:[#allocation2 + $0x74] sm:$0xf]
    %v84 = vld [vmem:[#allocation2 + $0x78] sm:$0xf]
    %v85 = vld [vmem:[#allocation2 + $0x7c] sm:$0xf]
    %v86 = vld [vmem:[#allocation5] sm:$0xf]
    %v87 = vld [vmem:[#allocation5 + $0x4] sm:$0xf]
    %v88 = vld [vmem:[#allocation5 + $0x8] sm:$0xf]
    %v89 = vld [vmem:[#allocation5 + $0xc] sm:$0xf]
    %v90 = vld [vmem:[#allocation5 + $0x10] sm:$0xf]
    %v91 = vld [vmem:[#allocation5 + $0x14] sm:$0xf]
    %v92 = vld [vmem:[#allocation5 + $0x18] sm:$0xf]
    %v93 = vld [vmem:[#allocation5 + $0x1c] sm:$0xf]
    %v94 = vld [vmem:[#allocation5 + $0x20] sm:$0xf]
    %v95 = vld [vmem:[#allocation5 + $0x24] sm:$0xf]
    %v96 = vld [vmem:[#allocation5 + $0x28] sm:$0xf]
    %v97 = vld [vmem:[#allocation5 + $0x2c] sm:$0xf]
    %v98 = vld [vmem:[#allocation5 + $0x30] sm:$0xf]
    %v99 = vld [vmem:[#allocation5 + $0x34] sm:$0xf]
    %v100 = vld [vmem:[#allocation5 + $0x38] sm:$0xf]
    %v101 = vld [vmem:[#allocation5 + $0x3c] sm:$0xf]
    %v134 = vunpack.c.l.b16 %v54
    %v135 = vunpack.c.l.b16 %v55
    %v136 = vunpack.c.l.b16 %v56
    %v137 = vunpack.c.l.b16 %v57
    %v138 = vunpack.c.l.b16 %v58
    %v139 = vunpack.c.l.b16 %v59
    %v140 = vunpack.c.l.b16 %v60
    %v141 = vunpack.c.l.b16 %v61
    %v142 = vunpack.c.l.b16 %v62
    %v143 = vunpack.c.l.b16 %v63
    %v144 = vunpack.c.l.b16 %v64
    %v145 = vunpack.c.l.b16 %v65
    %v146 = vunpack.c.l.b16 %v66
    %v147 = vunpack.c.l.b16 %v67
    %v148 = vunpack.c.l.b16 %v68
    %v149 = vunpack.c.l.b16 %v69
    %v150 = vunpack.c.l.b16 %v70
    %v151 = vunpack.c.l.b16 %v71
    %v152 = vunpack.c.l.b16 %v72
    %v153 = vunpack.c.l.b16 %v73
    %v154 = vunpack.c.l.b16 %v74
    %v155 = vunpack.c.l.b16 %v75
    %v156 = vunpack.c.l.b16 %v76
    %v157 = vunpack.c.l.b16 %v77
    %v158 = vunpack.c.l.b16 %v78
    %v159 = vunpack.c.l.b16 %v79
    %v160 = vunpack.c.l.b16 %v80
    %v161 = vunpack.c.l.b16 %v81
    %v162 = vunpack.c.l.b16 %v82
    %v163 = vunpack.c.l.b16 %v83
    %v164 = vunpack.c.l.b16 %v84
    %v165 = vunpack.c.l.b16 %v85
    %v166 = vpack.c.b16 %v135, %v134
    %v167 = vpack.c.b16 %v137, %v136
    %v168 = vpack.c.b16 %v139, %v138
    %v169 = vpack.c.b16 %v141, %v140
    %v170 = vpack.c.b16 %v143, %v142
    %v171 = vpack.c.b16 %v145, %v144
    %v172 = vpack.c.b16 %v147, %v146
    %v173 = vpack.c.b16 %v149, %v148
    %v174 = vpack.c.b16 %v151, %v150
    %v175 = vpack.c.b16 %v153, %v152
    %v176 = vpack.c.b16 %v155, %v154
    %v177 = vpack.c.b16 %v157, %v156
    %v178 = vpack.c.b16 %v159, %v158
    %v179 = vpack.c.b16 %v161, %v160
    %v180 = vpack.c.b16 %v163, %v162
    %v181 = vpack.c.b16 %v165, %v164
    %v214 = vunpack.c.l.b16 %v86
    %v215 = vunpack.c.l.b16 %v87
    %v216 = vunpack.c.l.b16 %v88
    %v217 = vunpack.c.l.b16 %v89
    %v218 = vunpack.c.l.b16 %v90
    %v219 = vunpack.c.l.b16 %v91
    %v220 = vunpack.c.l.b16 %v92
    %v221 = vunpack.c.l.b16 %v93
    %v222 = vunpack.c.l.b16 %v94
    %v223 = vunpack.c.l.b16 %v95
    %v224 = vunpack.c.l.b16 %v96
    %v225 = vunpack.c.l.b16 %v97
    %v226 = vunpack.c.l.b16 %v98
    %v227 = vunpack.c.l.b16 %v99
    %v228 = vunpack.c.l.b16 %v100
    %v229 = vunpack.c.l.b16 %v101
    %v230 = vpack.c.b16 %v215, %v214
    %v231 = vpack.c.b16 %v217, %v216
    %v232 = vpack.c.b16 %v219, %v218
    %v233 = vpack.c.b16 %v221, %v220
    %v234 = vpack.c.b16 %v223, %v222
    %v235 = vpack.c.b16 %v225, %v224
    %v236 = vpack.c.b16 %v227, %v226
    %v237 = vpack.c.b16 %v229, %v228
    %246 = vmatpush.bf16.msra.mxu0 %v237
    %247 = vmatpush.bf16.msra.mxu0 %v236
    %248 = vmatpush.bf16.msra.mxu0 %v235
    %249 = vmatpush.bf16.msra.mxu0 %v234
    %250 = vmatpush.bf16.msra.mxu0 %v233
    %251 = vmatpush.bf16.msra.mxu0 %v232
    %252 = vmatpush.bf16.msra.mxu0 %v231
    %253 = vmatpush.bf16.msra.mxu0 %v230
    %254 = vmatmul.bf16.gmra.mxu0 %v166
    %v255 = vpop.f32.mrf.mxu0
    %v256 = vadd.f32 0.0, %v255
    %v257 = vpop.f32.mrf.mxu0
    %v258 = vadd.f32 0.0, %v257
    %259 = vmatmul.bf16.gmra.mxu0 %v167
    %v260 = vpop.f32.mrf.mxu0
    %v261 = vadd.f32 0.0, %v260
    %v262 = vpop.f32.mrf.mxu0
    %v263 = vadd.f32 0.0, %v262
    %264 = vmatmul.bf16.gmra.mxu0 %v168
    %v265 = vpop.f32.mrf.mxu0
    %v266 = vadd.f32 0.0, %v265
    %v267 = vpop.f32.mrf.mxu0
    %v268 = vadd.f32 0.0, %v267
    %269 = vmatmul.bf16.gmra.mxu0 %v169
    %v270 = vpop.f32.mrf.mxu0
    %v271 = vadd.f32 0.0, %v270
    %v272 = vpop.f32.mrf.mxu0
    %v273 = vadd.f32 0.0, %v272
    %274 = vmatmul.bf16.gmra.mxu0 %v170
    %v275 = vpop.f32.mrf.mxu0
    %v276 = vadd.f32 0.0, %v275
    %v277 = vpop.f32.mrf.mxu0
    %v278 = vadd.f32 0.0, %v277
    %279 = vmatmul.bf16.gmra.mxu0 %v171
    %v280 = vpop.f32.mrf.mxu0
    %v281 = vadd.f32 0.0, %v280
    %v282 = vpop.f32.mrf.mxu0
    %v283 = vadd.f32 0.0, %v282
    %284 = vmatmul.bf16.gmra.mxu0 %v172
    %v285 = vpop.f32.mrf.mxu0
    %v286 = vadd.f32 0.0, %v285
    %v287 = vpop.f32.mrf.mxu0
    %v288 = vadd.f32 0.0, %v287
    %289 = vmatmul.bf16.gmra.mxu0 %v173
    %v290 = vpop.f32.mrf.mxu0
    %v291 = vadd.f32 0.0, %v290
    %v292 = vpop.f32.mrf.mxu0
    %v293 = vadd.f32 0.0, %v292
    %294 = vmatmul.bf16.gmra.mxu0 %v174
    %v295 = vpop.f32.mrf.mxu0
    %v296 = vadd.f32 0.0, %v295
    %v297 = vpop.f32.mrf.mxu0
    %v298 = vadd.f32 0.0, %v297
    %299 = vmatmul.bf16.gmra.mxu0 %v175
    %v300 = vpop.f32.mrf.mxu0
    %v301 = vadd.f32 0.0, %v300
    %v302 = vpop.f32.mrf.mxu0
    %v303 = vadd.f32 0.0, %v302
    %304 = vmatmul.bf16.gmra.mxu0 %v176
    %v305 = vpop.f32.mrf.mxu0
    %v306 = vadd.f32 0.0, %v305
    %v307 = vpop.f32.mrf.mxu0
    %v308 = vadd.f32 0.0, %v307
    %309 = vmatmul.bf16.gmra.mxu0 %v177
    %v310 = vpop.f32.mrf.mxu0
    %v311 = vadd.f32 0.0, %v310
    %v312 = vpop.f32.mrf.mxu0
    %v313 = vadd.f32 0.0, %v312
    %314 = vmatmul.bf16.gmra.mxu0 %v178
    %v315 = vpop.f32.mrf.mxu0
    %v316 = vadd.f32 0.0, %v315
    %v317 = vpop.f32.mrf.mxu0
    %v318 = vadd.f32 0.0, %v317
    %319 = vmatmul.bf16.gmra.mxu0 %v179
    %v320 = vpop.f32.mrf.mxu0
    %v321 = vadd.f32 0.0, %v320
    %v322 = vpop.f32.mrf.mxu0
    %v323 = vadd.f32 0.0, %v322
    %324 = vmatmul.bf16.gmra.mxu0 %v180
    %v325 = vpop.f32.mrf.mxu0
    %v326 = vadd.f32 0.0, %v325
    %v327 = vpop.f32.mrf.mxu0
    %v328 = vadd.f32 0.0, %v327
    %329 = vmatmul.bf16.gmra.mxu0 %v181
    %v330 = vpop.f32.mrf.mxu0
    %v331 = vadd.f32 0.0, %v330
    %v332 = vpop.f32.mrf.mxu0
    %v333 = vadd.f32 0.0, %v332
    %334 = vdwg.mxu0
    %335 = vst [vmem:[#allocation7] sm:$0xff] %v256
    %336 = vst [vmem:[#allocation7 + $0x8] sm:$0xff] %v258
    %337 = vst [vmem:[#allocation7 + $0x10] sm:$0xff] %v261
    %338 = vst [vmem:[#allocation7 + $0x18] sm:$0xff] %v263
    %339 = vst [vmem:[#allocation7 + $0x20] sm:$0xff] %v266
    %340 = vst [vmem:[#allocation7 + $0x28] sm:$0xff] %v268
    %341 = vst [vmem:[#allocation7 + $0x30] sm:$0xff] %v271
    %342 = vst [vmem:[#allocation7 + $0x38] sm:$0xff] %v273
    %343 = vst [vmem:[#allocation7 + $0x40] sm:$0xff] %v276
    %344 = vst [vmem:[#allocation7 + $0x48] sm:$0xff] %v278
    %345 = vst [vmem:[#allocation7 + $0x50] sm:$0xff] %v281
    %346 = vst [vmem:[#allocation7 + $0x58] sm:$0xff] %v283
    %347 = vst [vmem:[#allocation7 + $0x60] sm:$0xff] %v286
    %348 = vst [vmem:[#allocation7 + $0x68] sm:$0xff] %v288
    %349 = vst [vmem:[#allocation7 + $0x70] sm:$0xff] %v291
    %350 = vst [vmem:[#allocation7 + $0x78] sm:$0xff] %v293
    %351 = vst [vmem:[#allocation7 + $0x80] sm:$0xff] %v296
    %352 = vst [vmem:[#allocation7 + $0x88] sm:$0xff] %v298
    %353 = vst [vmem:[#allocation7 + $0x90] sm:$0xff] %v301
    %354 = vst [vmem:[#allocation7 + $0x98] sm:$0xff] %v303
    %355 = vst [vmem:[#allocation7 + $0xa0] sm:$0xff] %v306
    %356 = vst [vmem:[#allocation7 + $0xa8] sm:$0xff] %v308
    %357 = vst [vmem:[#allocation7 + $0xb0] sm:$0xff] %v311
    %358 = vst [vmem:[#allocation7 + $0xb8] sm:$0xff] %v313
    %359 = vst [vmem:[#allocation7 + $0xc0] sm:$0xff] %v316
    %360 = vst [vmem:[#allocation7 + $0xc8] sm:$0xff] %v318
    %361 = vst [vmem:[#allocation7 + $0xd0] sm:$0xff] %v321
    %362 = vst [vmem:[#allocation7 + $0xd8] sm:$0xff] %v323
    %363 = vst [vmem:[#allocation7 + $0xe0] sm:$0xff] %v326
    %364 = vst [vmem:[#allocation7 + $0xe8] sm:$0xff] %v328
    %365 = vst [vmem:[#allocation7 + $0xf0] sm:$0xff] %v331
    %366 = vst [vmem:[#allocation7 + $0xf8] sm:$0xff] %v333
    %v367 = vld [vmem:[#allocation8] sm:$0x1]
    %v368 = vadd.f32 %v256, %v258
    %v369 = vadd.f32 %v368, %v261
    %v370 = vadd.f32 %v369, %v263
    %v371 = vadd.f32 %v370, %v266
    %v372 = vadd.f32 %v371, %v268
    %v373 = vadd.f32 %v372, %v271
    %v374 = vadd.f32 %v373, %v273
    %v375 = vadd.f32 %v374, %v276
    %v376 = vadd.f32 %v375, %v278
    %v377 = vadd.f32 %v376, %v281
    %v378 = vadd.f32 %v377, %v283
    %v379 = vadd.f32 %v378, %v286
    %v380 = vadd.f32 %v379, %v288
    %v381 = vadd.f32 %v380, %v291
    %v382 = vadd.f32 %v381, %v293
    %v383 = vadd.f32 %v382, %v296
    %v384 = vadd.f32 %v383, %v298
    %v385 = vadd.f32 %v384, %v301
    %v386 = vadd.f32 %v385, %v303
    %v387 = vadd.f32 %v386, %v306
    %v388 = vadd.f32 %v387, %v308
    %v389 = vadd.f32 %v388, %v311
    %v390 = vadd.f32 %v389, %v313
    %v391 = vadd.f32 %v390, %v316
    %v392 = vadd.f32 %v391, %v318
    %v393 = vadd.f32 %v392, %v321
    %v394 = vadd.f32 %v393, %v323
    %v395 = vadd.f32 %v394, %v326
    %v396 = vadd.f32 %v395, %v328
    %v397 = vadd.f32 %v396, %v331
    %v398 = vadd.f32 %v397, %v333
    %v399 = vrot.slane %v398, 4
    %v400 = vadd.f32 %v398, %v399
    %v401 = vrot.slane %v400, 2
    %v402 = vadd.f32 %v400, %v401
    %v403 = vrot.slane %v402, 1
    %v404 = vadd.f32 %v402, %v403
    %v405 = vadd.f32 %v367, %v404
    %406 = vst [vmem:[#allocation8] sm:$0x1] %v405
    %v407 = vld [vmem:[#allocation10] sm:$0x1]
    %v408 = vmul.f32 %v256, %v256
    %v409 = vmul.f32 %v258, %v258
    %v410 = vmul.f32 %v261, %v261
    %v411 = vmul.f32 %v263, %v263
    %v412 = vmul.f32 %v266, %v266
    %v413 = vmul.f32 %v268, %v268
    %v414 = vmul.f32 %v271, %v271
    %v415 = vmul.f32 %v273, %v273
    %v416 = vmul.f32 %v276, %v276
    %v417 = vmul.f32 %v278, %v278
    %v418 = vmul.f32 %v281, %v281
    %v419 = vmul.f32 %v283, %v283
    %v420 = vmul.f32 %v286, %v286
    %v421 = vmul.f32 %v288, %v288
    %v422 = vmul.f32 %v291, %v291
    %v423 = vmul.f32 %v293, %v293
    %v424 = vmul.f32 %v296, %v296
    %v425 = vmul.f32 %v298, %v298
    %v426 = vmul.f32 %v301, %v301
    %v427 = vmul.f32 %v303, %v303
    %v428 = vmul.f32 %v306, %v306
    %v429 = vmul.f32 %v308, %v308
    %v430 = vmul.f32 %v311, %v311
    %v431 = vmul.f32 %v313, %v313
    %v432 = vmul.f32 %v316, %v316
    %v433 = vmul.f32 %v318, %v318
    %v434 = vmul.f32 %v321, %v321
    %v435 = vmul.f32 %v323, %v323
    %v436 = vmul.f32 %v326, %v326
    %v437 = vmul.f32 %v328, %v328
    %v438 = vmul.f32 %v331, %v331
    %v439 = vmul.f32 %v333, %v333
    %v440 = vadd.f32 %v408, %v409
    %v441 = vadd.f32 %v440, %v410
    %v442 = vadd.f32 %v441, %v411
    %v443 = vadd.f32 %v442, %v412
    %v444 = vadd.f32 %v443, %v413
    %v445 = vadd.f32 %v444, %v414
    %v446 = vadd.f32 %v445, %v415
    %v447 = vadd.f32 %v446, %v416
    %v448 = vadd.f32 %v447, %v417
    %v449 = vadd.f32 %v448, %v418
    %v450 = vadd.f32 %v449, %v419
    %v451 = vadd.f32 %v450, %v420
    %v452 = vadd.f32 %v451, %v421
    %v453 = vadd.f32 %v452, %v422
    %v454 = vadd.f32 %v453, %v423
    %v455 = vadd.f32 %v454, %v424
    %v456 = vadd.f32 %v455, %v425
    %v457 = vadd.f32 %v456, %v426
    %v458 = vadd.f32 %v457, %v427
    %v459 = vadd.f32 %v458, %v428
    %v460 = vadd.f32 %v459, %v429
    %v461 = vadd.f32 %v460, %v430
    %v462 = vadd.f32 %v461, %v431
    %v463 = vadd.f32 %v462, %v432
    %v464 = vadd.f32 %v463, %v433
    %v465 = vadd.f32 %v464, %v434
    %v466 = vadd.f32 %v465, %v435
    %v467 = vadd.f32 %v466, %v436
    %v468 = vadd.f32 %v467, %v437
    %v469 = vadd.f32 %v468, %v438
    %v470 = vadd.f32 %v469, %v439
    %v471 = vrot.slane %v470, 4
    %v472 = vadd.f32 %v470, %v471
    %v473 = vrot.slane %v472, 2
    %v474 = vadd.f32 %v472, %v473
    %v475 = vrot.slane %v474, 1
    %v476 = vadd.f32 %v474, %v475
    %v477 = vadd.f32 %v407, %v476
    %478 = vst [vmem:[#allocation10] sm:$0x1] %v477
    // Predicated region
    $region22: #{tpu_custom_call.1} parent=1 // pred_check
      _
    $region23: #{tpu_custom_call.1} parent=1 // pred_check_branch
      %480 = sbr.rel (0) target = $region25
    $region24: #{tpu_custom_call.1} parent=1 // pred_region
      %482 = vsyncadd [#allocation4], 0
      %s483 = sshll.u32 [#allocation7], 4
      %s484 = int_to_ptr.vmem [resolvable:$true] %s483
      %s485 = sshll.u32 %s2, 4
      %s486 = int_to_ptr.hbm [resolvable:$true] %s485
      %491 = dma.vmem_to_hbm [thread:$0]  %s484, 4096, %s486, [#allocation4], 128, 128, 8
    $region25: #{tpu_custom_call.1} parent=1 // pred_fallthru
      _
    // Predicated region
    $region26: #{tpu_custom_call.1} parent=1 // pred_check
      _
    $region27: #{tpu_custom_call.1} parent=1 // pred_check_branch
      %493 = sbr.rel (0) target = $region29
    $region28: #{tpu_custom_call.1} parent=1 // pred_region
      %495 = vsyncadd [#allocation9], 0
      %s497 = sshll.u32 [#allocation8], 4
      %s498 = int_to_ptr.vmem [resolvable:$true] %s497
      %s499 = sshll.u32 %s3, 4
      %s500 = int_to_ptr.hbm [resolvable:$true] %s499
      %502 = dma.vmem_to_hbm [thread:$0]  %s498, 16, %s500, [#allocation9]
    $region29: #{tpu_custom_call.1} parent=1 // pred_fallthru
      _
    // Predicated region
    $region30: #{tpu_custom_call.1} parent=1 // pred_check
      _
    $region31: #{tpu_custom_call.1} parent=1 // pred_check_branch
      %504 = sbr.rel (0) target = $region33
    $region32: #{tpu_custom_call.1} parent=1 // pred_region
      %506 = vsyncadd [#allocation9], 0
      %s508 = sshll.u32 [#allocation10], 4
      %s509 = int_to_ptr.vmem [resolvable:$true] %s508
      %s510 = sshll.u32 %s4, 4
      %s511 = int_to_ptr.hbm [resolvable:$true] %s510
      %513 = dma.vmem_to_hbm [thread:$0]  %s509, 16, %s511, [#allocation9]
    $region33: #{tpu_custom_call.1} parent=1 // pred_fallthru
      _
    // Predicated region
    $region34: #{tpu_custom_call.1} parent=1 // pred_check
      _
    $region35: #{tpu_custom_call.1} parent=1 // pred_check_branch
      %515 = sbr.rel (0) target = $region37
    $region36: #{tpu_custom_call.1} parent=1 // pred_region
      %517 = dma.done [#allocation4], 4096
    $region37: #{tpu_custom_call.1} parent=1 // pred_fallthru
      _
    // Predicated region
    $region38: #{tpu_custom_call.1} parent=1 // pred_check
      _
    $region39: #{tpu_custom_call.1} parent=1 // pred_check_branch
      %519 = sbr.rel (0) target = $region41
    $region40: #{tpu_custom_call.1} parent=1 // pred_region
      %521 = dma.done [#allocation9], 16
    $region41: #{tpu_custom_call.1} parent=1 // pred_fallthru
      _
    // Predicated region
    $region42: #{tpu_custom_call.1} parent=1 // pred_check
      _
    $region43: #{tpu_custom_call.1} parent=1 // pred_check_branch
      %523 = sbr.rel (0) target = $region45
    $region44: #{tpu_custom_call.1} parent=1 // pred_region
      %525 = dma.done [#allocation9], 16
    $region45: #{tpu_custom_call.1} parent=1 // pred_fallthru
      _
    %526 = vsyncpa [#allocation3], 1
    %527 = vsyncpa [#allocation6], 1
    %528 = vsyncpa [#allocation4], 1
    %529 = vsyncpa [#allocation9], 1

</llo_original>
